<compile_context>
chip_gen: v7x
topology: tpu7x:2x2x1
jax: 0.10.0
libtpu: 0.0.40
codegen_flags: <defaults>
</compile_context>

<pallas_src>
import functools

import jax
import jax.numpy as jnp
from jax.experimental import pallas as pl
from jax.experimental.pallas import tpu as pltpu


def _round_up(n, m):
    return (n + m - 1) // m * m


def _cdiv(a, b):
    return (a + b - 1) // b


def _vmem_capacity_bytes():
    try:
        return int(pltpu.get_tpu_info().vmem_capacity_bytes)
    except Exception:
        return 64 << 20          # conservative: v7x per-TensorCore VMEM


def _is_dual_core_chip():
    # v7x feeds its 2 TensorCores by sharding the "parallel" grid axis.
    try:
        kind = jax.devices()[0].device_kind.lower()
    except Exception:
        return False
    return "v7" in kind


# ---------------------------------------------------------------------------
# Kernels
# ---------------------------------------------------------------------------

def ffn_kernel_single(x_ref, w1_ref, b1_ref, w2_ref, b2_ref, o_ref):
    """Single hidden tile: no accumulator scratch, no init/finalize."""
    h = jnp.dot(x_ref[...], w1_ref[...], preferred_element_type=jnp.float32)
    h = jnp.maximum(h + b1_ref[...], 0.0)                    # (tm, H) + (1, H)
    acc = jnp.dot(h.astype(w2_ref.dtype), w2_ref[...],
                  preferred_element_type=jnp.float32)
    o_ref[...] = (acc + b2_ref[...]).astype(o_ref.dtype)


def ffn_kernel_acc(x_ref, w1_ref, b1_ref, w2_ref, b2_ref, o_ref, acc_ref):
    """Hidden tiled on a trailing 'arbitrary' axis; f32 resident accumulator."""
    h_idx = pl.program_id(1)

    @pl.when(h_idx == 0)
    def _():
        acc_ref[...] = jnp.zeros_like(acc_ref)

    # First linear (MXU) + bias + ReLU on this hidden tile.
    h = jnp.dot(x_ref[...], w1_ref[...], preferred_element_type=jnp.float32)
    h = jnp.maximum(h + b1_ref[...], 0.0)                    # (tm, th) + (1, th)

    # Second linear: accumulate partial products over hidden tiles in f32.
    acc_ref[...] += jnp.dot(h.astype(w2_ref.dtype), w2_ref[...],
                            preferred_element_type=jnp.float32)

    # Finalize: add b2 exactly once, cast, store lane-dense output tile.
    @pl.when(h_idx == pl.num_programs(1) - 1)
    def _():
        o_ref[...] = (acc_ref[...] + b2_ref[...]).astype(o_ref.dtype)


# ---------------------------------------------------------------------------
# Host-side wrappers
# ---------------------------------------------------------------------------

def prepare_ffn_params(w1, b1, w2, b2, *, th=512, param_dtype=jnp.bfloat16):
    """Pad + cast FFN parameters ONCE, outside the hot path.

    w1: (dim, hidden)  == PyTorch net[0].weight.T
    b1: (hidden,)      == net[0].bias
    w2: (hidden, dim)  == PyTorch net[2].weight.T
    b2: (dim,)         == net[2].bias
    Returns ((w1p, b1p, w2p, b2p), th_eff); pass th_eff to feed_forward.
    """
    dim, hidden = w1.shape
    dim_p = _round_up(dim, 128)

    # Hidden tile: multiple of 256 when possible (v6e/v7x MXU is 2x256x256),
    # 128 otherwise; shrink until double-buffered W1+W2 tiles fit a fraction
    # of this generation's VMEM (v7x: 64 MiB per TensorCore).
    align = 256 if hidden >= 256 else 128
    th_eff = min(_round_up(th, align), _round_up(hidden, align))
    p_item = jnp.dtype(param_dtype).itemsize
    w_budget = int(0.4 * _vmem_capacity_bytes())
    while th_eff > 128 and 2 * 2 * dim_p * th_eff * p_item > w_budget:
        th_eff = max((th_eff // 2) // 128 * 128, 128)
    hidden_p = _round_up(hidden, th_eff)

    # Zero padding is exact (see feed_forward).  Biases stay f32.
    w1p = jnp.pad(w1, ((0, dim_p - dim),
                       (0, hidden_p - hidden))).astype(param_dtype)
    b1p = jnp.pad(b1, (0, hidden_p - hidden)).astype(jnp.float32) \
             .reshape(1, hidden_p)
    w2p = jnp.pad(w2, ((0, hidden_p - hidden),
                       (0, dim_p - dim))).astype(param_dtype)
    b2p = jnp.pad(b2, (0, dim_p - dim)).astype(jnp.float32).reshape(1, dim_p)
    return (w1p, b1p, w2p, b2p), th_eff


@functools.partial(jax.jit, static_argnames=("th_eff", "tm", "compute_dtype"))
def feed_forward(x, w1p, b1p, w2p, b2p, *, th_eff, tm=512,
                 compute_dtype=jnp.bfloat16):
    """x: (batch, seq, dim); params from prepare_ffn_params.
    Returns (batch, seq, dim) in x.dtype."""
    batch, seq, dim = x.shape
    dim_p, hidden_p = w1p.shape
    M = batch * seq

    # Row tiling: pad rows only to 8 and pick the tile as ceil(M/k), 8-aligned,
    # so small / odd M doesn't round up to a full tile of wasted matmul work.
    M_p8 = _round_up(M, 8)
    n_row = max(1, _cdiv(M_p8, tm))
    if n_row == 1 and M_p8 >= 16 and _is_dual_core_chip():
        n_row = 2                       # keep both v7x TensorCores busy
    tm_eff = _round_up(_cdiv(M_p8, n_row), 8)
    M_p = n_row * tm_eff
    n_hid = hidden_p // th_eff

    c_item = jnp.dtype(compute_dtype).itemsize
    o_item = jnp.dtype(x.dtype).itemsize

    # Zero padding is exact: padded x cols hit zero W1 rows, padded hidden
    # cols give ReLU(0+0)=0 into zero W2 rows, padded rows / out cols are
    # sliced off below.  bf16 cast feeds the MXU at full rate and halves DMA.
    x2 = jnp.pad(x.reshape(M, dim),
                 ((0, M_p - M), (0, dim_p - dim))).astype(compute_dtype)

    # VMEM budget: double-buffered blocks + materialized (tm, th) activation
    # (f32 + bf16 cast) + resident f32 accumulator (multi-tile path only),
    # capped generation-aware at 75% of physical VMEM (v7x = 64 MiB).
    est = (2 * (tm_eff * dim_p * c_item          # x block
                + dim_p * th_eff * c_item        # W1 tile
                + th_eff * 4                     # b1 tile (f32)
                + th_eff * dim_p * c_item        # W2 tile
                + dim_p * 4                      # b2 (f32)
                + tm_eff * dim_p * o_item)       # out block
           + tm_eff * th_eff * (4 + c_item)      # h (f32) + bf16 cast of h
           + (tm_eff * dim_p * 4 if n_hid > 1 else 0))
    vmem_cap = _vmem_capacity_bytes()
    vmem_limit = int(min(max(est + (8 << 20), 32 << 20), (vmem_cap * 3) // 4))

    # Weights are re-streamed from HBM once per row tile (their index_maps
    # depend on the hidden axis, which resets when the row index advances).
    cost = pl.CostEstimate(
        flops=4 * M_p * dim_p * hidden_p,
        transcendentals=0,
        bytes_accessed=(M_p * dim_p * (c_item + o_item)            # x in, out
                        + n_row * (2 * dim_p * hidden_p * c_item   # W1+W2
                                   + (hidden_p + dim_p) * 4)))     # biases

    if n_hid == 1:
        # Fast path: whole hidden dim in one tile, no accumulator scratch.
        grid_spec = pltpu.PrefetchScalarGridSpec(
            num_scalar_prefetch=0,
            grid=(n_row,),
            in_specs=[
                pl.BlockSpec((tm_eff, dim_p), lambda i: (i, 0)),     # x rows
                pl.BlockSpec((dim_p, hidden_p), lambda i: (0, 0)),   # W1
                pl.BlockSpec((1, hidden_p), lambda i: (0, 0)),       # b1
                pl.BlockSpec((hidden_p, dim_p), lambda i: (0, 0)),   # W2
                pl.BlockSpec((1, dim_p), lambda i: (0, 0)),          # b2
            ],
            out_specs=pl.BlockSpec((tm_eff, dim_p), lambda i: (i, 0)),
        )
        kernel = ffn_kernel_single
        dims = ("parallel",)
    else:
        # rows (parallel, megacore-shardable), hidden (reduction, last).
        grid_spec = pltpu.PrefetchScalarGridSpec(
            num_scalar_prefetch=0,
            grid=(n_row, n_hid),
            in_specs=[
                pl.BlockSpec((tm_eff, dim_p), lambda i, h: (i, 0)),  # x rows
                pl.BlockSpec((dim_p, th_eff), lambda i, h: (0, h)),  # W1 tile
                pl.BlockSpec((1, th_eff), lambda i, h: (0, h)),      # b1 tile
                pl.BlockSpec((th_eff, dim_p), lambda i, h: (h, 0)),  # W2 tile
                pl.BlockSpec((1, dim_p), lambda i, h: (0, 0)),       # b2
            ],
            # output block index independent of h -> accumulator stays resident
            out_specs=pl.BlockSpec((tm_eff, dim_p), lambda i, h: (i, 0)),
            scratch_shapes=[pltpu.VMEM((tm_eff, dim_p), jnp.float32)],
        )
        kernel = ffn_kernel_acc
        dims = ("parallel", "arbitrary")

    out = pl.pallas_call(
        kernel,
        out_shape=jax.ShapeDtypeStruct((M_p, dim_p), x.dtype),
        grid_spec=grid_spec,
        compiler_params=pltpu.CompilerParams(
            dimension_semantics=dims,
            vmem_limit_bytes=vmem_limit),
        cost_estimate=cost,
    )(x2, w1p, b1p, w2p, b2p)

    return out[:M, :dim].reshape(batch, seq, dim)


# ---------------------------------------------------------------------------
# Demo / correctness check
# ---------------------------------------------------------------------------

if __name__ == "__main__":
    key = jax.random.PRNGKey(0)

    def make_params(kw1, kb1, kw2, kb2, dim, hidden):
        # PyTorch Linear init ranges; stored pre-transposed as (in, out).
        scale1 = 1.0 / jnp.sqrt(dim)
        scale2 = 1.0 / jnp.sqrt(hidden)
        w1 = jax.random.uniform(kw1, (dim, hidden), jnp.float32, -scale1, scale1)
        b1 = jax.random.uniform(kb1, (hidden,), jnp.float32, -scale1, scale1)
        w2 = jax.random.uniform(kw2, (hidden, dim), jnp.float32, -scale2, scale2)
        b2 = jax.random.uniform(kb2, (dim,), jnp.float32, -scale2, scale2)
        return w1, b1, w2, b2

    # Case 1: small FFN -> single-hidden-tile fast path.
    batch, seq, dim, hidden = 2, 8, 32, 64
    kx, kw1, kb1, kw2, kb2, key = jax.random.split(key, 6)
    x = jax.random.normal(kx, (batch, seq, dim), dtype=jnp.float32)
    w1, b1, w2, b2 = make_params(kw1, kb1, kw2, kb2, dim, hidden)
    params, th_eff = prepare_ffn_params(w1, b1, w2, b2)
    out = feed_forward(x, *params, th_eff=th_eff)
    jax.block_until_ready(out)
    ref = jnp.maximum(x @ w1 + b1, 0.0) @ w2 + b2
    assert out.shape == (batch, seq, dim)
    # bf16 compute operands -> tolerance relaxed vs the pure-f32 reference.
    assert jnp.allclose(out, ref, atol=5e-2, rtol=5e-2), \
        float(jnp.max(jnp.abs(out - ref)))

    # Case 2: hidden tiled in two chunks -> accumulator path.
    batch, seq, dim, hidden = 2, 8, 64, 512
    kx, kw1, kb1, kw2, kb2, key = jax.random.split(key, 6)
    x = jax.random.normal(kx, (batch, seq, dim), dtype=jnp.float32)
    w1, b1, w2, b2 = make_params(kw1, kb1, kw2, kb2, dim, hidden)
    params, th_eff = prepare_ffn_params(w1, b1, w2, b2, th=256)
    out = feed_forward(x, *params, th_eff=th_eff)
    jax.block_until_ready(out)
    ref = jnp.maximum(x @ w1 + b1, 0.0) @ w2 + b2
    assert out.shape == (batch, seq, dim)
    assert jnp.allclose(out, ref, atol=5e-2, rtol=5e-2), \
        float(jnp.max(jnp.abs(out - ref)))

    print("KERNEL_OK")
</pallas_src>

<mosaic_0001>
module attributes {stable_mosaic.version = 11 : i64} {
  func.func @ffn_kernel_single(%arg0: i32, %arg1: memref<16x128xbf16, #tpu.memory_space<vmem>>, %arg2: memref<128x128xbf16, #tpu.memory_space<vmem>>, %arg3: memref<1x128xf32, #tpu.memory_space<vmem>>, %arg4: memref<128x128xbf16, #tpu.memory_space<vmem>>, %arg5: memref<1x128xf32, #tpu.memory_space<vmem>>, %arg6: memref<16x128xf32, #tpu.memory_space<vmem>>) attributes {dimension_semantics = [#tpu.dimension_semantics<parallel>], iteration_bounds = array<i64: 1>, scalar_prefetch = 0 : i64, scratch_operands = 0 : i64, tpu.core_type = #tpu.core_type<tc>, window_params = [{transform_indices = @transform_0, window_bounds = array<i64: 16, 128>}, {pipeline_mode = #tpu.pipeline_mode<synchronous>, transform_indices = @transform_1, window_bounds = array<i64: 128, 128>}, {pipeline_mode = #tpu.pipeline_mode<synchronous>, transform_indices = @transform_2, window_bounds = array<i64: 1, 128>}, {pipeline_mode = #tpu.pipeline_mode<synchronous>, transform_indices = @transform_3, window_bounds = array<i64: 128, 128>}, {pipeline_mode = #tpu.pipeline_mode<synchronous>, transform_indices = @transform_4, window_bounds = array<i64: 1, 128>}, {transform_indices = @transform_5, window_bounds = array<i64: 16, 128>}]} {
    %c0 = arith.constant 0 : index
    %c0_0 = arith.constant 0 : index
    %0 = vector.load %arg1[%c0, %c0_0] : memref<16x128xbf16, #tpu.memory_space<vmem>>, vector<16x128xbf16>
    %c0_1 = arith.constant 0 : index
    %c0_2 = arith.constant 0 : index
    %1 = vector.load %arg2[%c0_1, %c0_2] : memref<128x128xbf16, #tpu.memory_space<vmem>>, vector<128x128xbf16>
    %cst = arith.constant dense<0.000000e+00> : vector<16x128xf32>
    %2 = tpu.matmul %0, %1, %cst {dimension_numbers = #tpu.dot_dimension_numbers<[1], [0], [0], [1], [0, 0, 1, 1], [], []>} : vector<16x128xbf16>, vector<128x128xbf16>, vector<16x128xf32> -> vector<16x128xf32>
    %c0_3 = arith.constant 0 : index
    %c0_4 = arith.constant 0 : index
    %3 = vector.load %arg3[%c0_3, %c0_4] : memref<1x128xf32, #tpu.memory_space<vmem>>, vector<1x128xf32>
    %4 = vector.broadcast %3 : vector<1x128xf32> to vector<16x128xf32>
    %5 = arith.addf %2, %4 : vector<16x128xf32>
    %cst_5 = arith.constant 0.000000e+00 : f32
    %6 = vector.broadcast %cst_5 : f32 to vector<16x128xf32>
    %7 = arith.maximumf %5, %6 : vector<16x128xf32>
    %8 = arith.truncf %7 : vector<16x128xf32> to vector<16x128xbf16>
    %c0_6 = arith.constant 0 : index
    %c0_7 = arith.constant 0 : index
    %9 = vector.load %arg4[%c0_6, %c0_7] : memref<128x128xbf16, #tpu.memory_space<vmem>>, vector<128x128xbf16>
    %cst_8 = arith.constant dense<0.000000e+00> : vector<16x128xf32>
    %10 = tpu.matmul %8, %9, %cst_8 {dimension_numbers = #tpu.dot_dimension_numbers<[1], [0], [0], [1], [0, 0, 1, 1], [], []>} : vector<16x128xbf16>, vector<128x128xbf16>, vector<16x128xf32> -> vector<16x128xf32>
    %c0_9 = arith.constant 0 : index
    %c0_10 = arith.constant 0 : index
    %11 = vector.load %arg5[%c0_9, %c0_10] : memref<1x128xf32, #tpu.memory_space<vmem>>, vector<1x128xf32>
    %12 = vector.broadcast %11 : vector<1x128xf32> to vector<16x128xf32>
    %13 = arith.addf %10, %12 : vector<16x128xf32>
    %c0_11 = arith.constant 0 : index
    %c0_12 = arith.constant 0 : index
    %14 = vector.load %arg6[%c0_11, %c0_12] : memref<16x128xf32, #tpu.memory_space<vmem>>, vector<16x128xf32>
    tpu.vector_store %arg6[%c0_11, %c0_12], %13 {strides = array<i32>} : memref<16x128xf32, #tpu.memory_space<vmem>>, vector<16x128xf32>,
    return
  }
  func.func @transform_0(%arg0: i32) -> (i32, i32) {
    %c0_i32 = arith.constant 0 : i32
    %c0_i32_0 = arith.constant 0 : i32
    return %arg0, %c0_i32 : i32, i32
  }
  func.func @transform_1(%arg0: i32) -> (i32, i32) {
    %c0_i32 = arith.constant 0 : i32
    %c0_i32_0 = arith.constant 0 : i32
    %c0_i32_1 = arith.constant 0 : i32
    return %c0_i32, %c0_i32_0 : i32, i32
  }
  func.func @transform_2(%arg0: i32) -> (i32, i32) {
    %c0_i32 = arith.constant 0 : i32
    %c0_i32_0 = arith.constant 0 : i32
    %c0_i32_1 = arith.constant 0 : i32
    return %c0_i32, %c0_i32_0 : i32, i32
  }
  func.func @transform_3(%arg0: i32) -> (i32, i32) {
    %c0_i32 = arith.constant 0 : i32
    %c0_i32_0 = arith.constant 0 : i32
    %c0_i32_1 = arith.constant 0 : i32
    return %c0_i32, %c0_i32_0 : i32, i32
  }
  func.func @transform_4(%arg0: i32) -> (i32, i32) {
    %c0_i32 = arith.constant 0 : i32
    %c0_i32_0 = arith.constant 0 : i32
    %c0_i32_1 = arith.constant 0 : i32
    return %c0_i32, %c0_i32_0 : i32, i32
  }
  func.func @transform_5(%arg0: i32) -> (i32, i32) {
    %c0_i32 = arith.constant 0 : i32
    %c0_i32_0 = arith.constant 0 : i32
    return %arg0, %c0_i32 : i32, i32
  }
}

</mosaic_0001>

<llo_original>
// kernel: feed_forward.1
$region0: #{feed_forward.1}
  #allocation0 [shape = 'u32[]', space=smem, size = 0x4, offset = 0x4, fixed_abs, tag = 'smem constant byte address 0x4 - core index']
  #allocation1 [shape = 'u32[144,128]{1,0:T(1,128)}', space=vmem, size = 0x12000, scoped, tag = 'internal scratch']
  %s0 = inlined_call_operand.vmem [shape: bf16[16,128], index: 0, kind: input, shape index: {}]
  %s1 = inlined_call_operand.hbm [shape: bf16[128,128], index: 1, kind: input, shape index: {}]
  %s2 = inlined_call_operand.vmem [shape: f32[1,128], index: 2, kind: input, shape index: {}]
  %s3 = inlined_call_operand.hbm [shape: bf16[128,128], index: 3, kind: input, shape index: {}]
  %s4 = inlined_call_operand.vmem [shape: f32[1,128], index: 4, kind: input, shape index: {}]
  %s5 = inlined_call_operand.vmem [shape: f32[16,128], index: 5, kind: output, shape index: {}]
  %s6 = sld [smem:[#allocation0]]
  $region38: #{feed_forward.1} parent=0
    _
  %s8 = ssub.s32 1, %s6
  %s9 = scalar_select 0, %s8, %s6
  $region1: #{feed_forward.1} parent=0
    #allocation2 [shape = 'u8[32768]{0}', space=vmem, size = 0x8000, scoped, tag = 'input window, operand 1, single buffered']
    #allocation3 [shape = 's32[1]{0}', space=sflag, size = 0x4, scoped, tag = 'scoped memory for feed_forward.1']
    #allocation4 [shape = 'u8[32768]{0}', space=vmem, size = 0x8000, scoped, tag = 'input window, operand 3, single buffered']
    #allocation5 [shape = 's32[1]{0}', space=sflag, size = 0x4, scoped, tag = 'scoped memory for feed_forward.1']
    %10 = vsyncpa [#allocation3], 0
    %11 = vsyncpa [#allocation5], 0
    // Predicated region
    $region2: #{feed_forward.1} parent=1 // pred_check
      _
    $region3: #{feed_forward.1} parent=1 // pred_check_branch
      %13 = sbr.rel (0) target = $region5
    $region4: #{feed_forward.1} parent=1 // pred_region
      _
    $region5: #{feed_forward.1} parent=1 // pred_fallthru
      _
    // Predicated region
    $region6: #{feed_forward.1} parent=1 // pred_check
      _
    $region7: #{feed_forward.1} parent=1 // pred_check_branch
      %15 = sbr.rel (0) target = $region9
    $region8: #{feed_forward.1} parent=1 // pred_region
      %s17 = ssub.s32 1024, 1024
      %18 = vsyncadd [#allocation3], %s17
      %s19 = sshll.u32 [#allocation2], 4
      %s20 = int_to_ptr.vmem [resolvable:$true] %s19
      %25 = dma.hbm_to_vmem [thread:$0]  %s1, 1024, %s20, [#allocation3], 64, 64, 4
    $region9: #{feed_forward.1} parent=1 // pred_fallthru
      _
    // Predicated region
    $region10: #{feed_forward.1} parent=1 // pred_check
      _
    $region11: #{feed_forward.1} parent=1 // pred_check_branch
      %27 = sbr.rel (0) target = $region13
    $region12: #{feed_forward.1} parent=1 // pred_region
      _
    $region13: #{feed_forward.1} parent=1 // pred_fallthru
      _
    // Predicated region
    $region14: #{feed_forward.1} parent=1 // pred_check
      _
    $region15: #{feed_forward.1} parent=1 // pred_check_branch
      %29 = sbr.rel (0) target = $region17
    $region16: #{feed_forward.1} parent=1 // pred_region
      %s31 = ssub.s32 1024, 1024
      %32 = vsyncadd [#allocation5], %s31
      %s33 = sshll.u32 [#allocation4], 4
      %s34 = int_to_ptr.vmem [resolvable:$true] %s33
      %39 = dma.hbm_to_vmem [thread:$0]  %s3, 1024, %s34, [#allocation5], 64, 64, 4
    $region17: #{feed_forward.1} parent=1 // pred_fallthru
      _
    // Predicated region
    $region18: #{feed_forward.1} parent=1 // pred_check
      _
    $region19: #{feed_forward.1} parent=1 // pred_check_branch
      %41 = sbr.rel (0) target = $region21
    $region20: #{feed_forward.1} parent=1 // pred_region
      _
    $region21: #{feed_forward.1} parent=1 // pred_fallthru
      _
    // Predicated region
    $region22: #{feed_forward.1} parent=1 // pred_check
      _
    $region23: #{feed_forward.1} parent=1 // pred_check_branch
      %43 = sbr.rel (0) target = $region25
    $region24: #{feed_forward.1} parent=1 // pred_region
      %44 = dma.done [#allocation3], 1024
    $region25: #{feed_forward.1} parent=1 // pred_fallthru
      _
    // Predicated region
    $region26: #{feed_forward.1} parent=1 // pred_check
      _
    $region27: #{feed_forward.1} parent=1 // pred_check_branch
      %46 = sbr.rel (0) target = $region29
    $region28: #{feed_forward.1} parent=1 // pred_region
      %47 = dma.done [#allocation5], 1024
    $region29: #{feed_forward.1} parent=1 // pred_fallthru
      _
    %v49 = vld [vmem:[%s0] sm:$0xf]
    %v50 = vld [vmem:[%s0 + $0x4] sm:$0xf]
    %v51 = vld [vmem:[#allocation2] sm:$0xf]
    %v52 = vld [vmem:[#allocation2 + $0x4] sm:$0xf]
    %v53 = vld [vmem:[#allocation2 + $0x8] sm:$0xf]
    %v54 = vld [vmem:[#allocation2 + $0xc] sm:$0xf]
    %v55 = vld [vmem:[#allocation2 + $0x10] sm:$0xf]
    %v56 = vld [vmem:[#allocation2 + $0x14] sm:$0xf]
    %v57 = vld [vmem:[#allocation2 + $0x18] sm:$0xf]
    %v58 = vld [vmem:[#allocation2 + $0x1c] sm:$0xf]
    %v59 = vld [vmem:[#allocation2 + $0x20] sm:$0xf]
    %v60 = vld [vmem:[#allocation2 + $0x24] sm:$0xf]
    %v61 = vld [vmem:[#allocation2 + $0x28] sm:$0xf]
    %v62 = vld [vmem:[#allocation2 + $0x2c] sm:$0xf]
    %v63 = vld [vmem:[#allocation2 + $0x30] sm:$0xf]
    %v64 = vld [vmem:[#allocation2 + $0x34] sm:$0xf]
    %v65 = vld [vmem:[#allocation2 + $0x38] sm:$0xf]
    %v66 = vld [vmem:[#allocation2 + $0x3c] sm:$0xf]
    %v67 = vld [vmem:[%s2] sm:$0x1]
    %v69 = vlaneseq
    %v70 = vshrl.u32 %v69, 7
    %v71 = vsub.s32 0, %v70
    %v72 = vrot.slane %v67, %v71
    %v76 = vunpack.c.l.b16 %v49
    %v77 = vunpack.c.l.b16 %v50
    %v78 = vpack.c.b16 %v77, %v76
    %v96 = vunpack.c.l.b16 %v51
    %v97 = vunpack.c.l.b16 %v52
    %v98 = vunpack.c.l.b16 %v53
    %v99 = vunpack.c.l.b16 %v54
    %v100 = vunpack.c.l.b16 %v55
    %v101 = vunpack.c.l.b16 %v56
    %v102 = vunpack.c.l.b16 %v57
    %v103 = vunpack.c.l.b16 %v58
    %v104 = vunpack.c.l.b16 %v59
    %v105 = vunpack.c.l.b16 %v60
    %v106 = vunpack.c.l.b16 %v61
    %v107 = vunpack.c.l.b16 %v62
    %v108 = vunpack.c.l.b16 %v63
    %v109 = vunpack.c.l.b16 %v64
    %v110 = vunpack.c.l.b16 %v65
    %v111 = vunpack.c.l.b16 %v66
    %v112 = vpack.c.b16 %v97, %v96
    %v113 = vpack.c.b16 %v99, %v98
    %v114 = vpack.c.b16 %v101, %v100
    %v115 = vpack.c.b16 %v103, %v102
    %v116 = vpack.c.b16 %v105, %v104
    %v117 = vpack.c.b16 %v107, %v106
    %v118 = vpack.c.b16 %v109, %v108
    %v119 = vpack.c.b16 %v111, %v110
    %128 = vmatprep.subr.bf16.mxu0 0
    %129 = vmatpush1.bf16.msra.mxu0 %v112
    %130 = vmatprep.subr.bf16.mxu0 0
    %131 = vmatpush1.bf16.msra.mxu0 %v113
    %132 = vmatprep.subr.bf16.mxu0 0
    %133 = vmatpush1.bf16.msra.mxu0 %v114
    %134 = vmatprep.subr.bf16.mxu0 0
    %135 = vmatpush1.bf16.msra.mxu0 %v115
    %136 = vmatprep.subr.bf16.mxu0 0
    %137 = vmatpush1.bf16.msra.mxu0 %v116
    %138 = vmatprep.subr.bf16.mxu0 0
    %139 = vmatpush1.bf16.msra.mxu0 %v117
    %140 = vmatprep.subr.bf16.mxu0 0
    %141 = vmatpush1.bf16.msra.mxu0 %v118
    %142 = vmatprep.subr.bf16.mxu0 0
    %143 = vmatpush1.bf16.msra.mxu0 %v119
    %144 = vmatprep.subr.bf16.mxu0 0
    %145 = vmatpush1.bf16.msra.mxu0 0
    %146 = vmatprep.subr.bf16.mxu0 0
    %147 = vmatpush1.bf16.msra.mxu0 0
    %148 = vmatprep.subr.bf16.mxu0 0
    %149 = vmatpush1.bf16.msra.mxu0 0
    %150 = vmatprep.subr.bf16.mxu0 0
    %151 = vmatpush1.bf16.msra.mxu0 0
    %152 = vmatprep.subr.bf16.mxu0 0
    %153 = vmatpush1.bf16.msra.mxu0 0
    %154 = vmatprep.subr.bf16.mxu0 0
    %155 = vmatpush1.bf16.msra.mxu0 0
    %156 = vmatprep.subr.bf16.mxu0 0
    %157 = vmatpush1.bf16.msra.mxu0 0
    %158 = vmatprep.subr.bf16.mxu0 0
    %159 = vmatpush1.bf16.msra.mxu0 0
    %160 = vmatprep.mubr.bf16.mxu0 0
    %161 = vmatmul.mubr.bf16.gmra.mrb[0].mxu0 %v78
    %v162 = vpop.f32.mrb[0].mxu0
    %v163 = vadd.f32 %v72, %v162
    %v164 = vpop.f32.mrb[0].mxu0
    %v165 = vpop.f32.mrb[0].mxu0
    %v166 = vadd.f32 %v72, %v165
    %v167 = vpop.f32.mrb[0].mxu0
    %168 = vdwg.mxu0
    %v169 = vmax.f32 %v163, 0.0
    %v170 = vmax.f32 %v166, 0.0
    %v171 = vpack.c.bf16 %v170, %v169
    %v172 = vld [vmem:[#allocation4] sm:$0xf]
    %v173 = vld [vmem:[#allocation4 + $0x4] sm:$0xf]
    %v174 = vld [vmem:[#allocation4 + $0x8] sm:$0xf]
    %v175 = vld [vmem:[#allocation4 + $0xc] sm:$0xf]
    %v176 = vld [vmem:[#allocation4 + $0x10] sm:$0xf]
    %v177 = vld [vmem:[#allocation4 + $0x14] sm:$0xf]
    %v178 = vld [vmem:[#allocation4 + $0x18] sm:$0xf]
    %v179 = vld [vmem:[#allocation4 + $0x1c] sm:$0xf]
    %v180 = vld [vmem:[#allocation4 + $0x20] sm:$0xf]
    %v181 = vld [vmem:[#allocation4 + $0x24] sm:$0xf]
    %v182 = vld [vmem:[#allocation4 + $0x28] sm:$0xf]
    %v183 = vld [vmem:[#allocation4 + $0x2c] sm:$0xf]
    %v184 = vld [vmem:[#allocation4 + $0x30] sm:$0xf]
    %v185 = vld [vmem:[#allocation4 + $0x34] sm:$0xf]
    %v186 = vld [vmem:[#allocation4 + $0x38] sm:$0xf]
    %v187 = vld [vmem:[#allocation4 + $0x3c] sm:$0xf]
    %v188 = vld [vmem:[%s4] sm:$0x1]
    %v190 = vlaneseq
    %v191 = vshrl.u32 %v190, 7
    %v192 = vsub.s32 0, %v191
    %v193 = vrot.slane %v188, %v192
    %v211 = vunpack.c.l.b16 %v172
    %v212 = vunpack.c.l.b16 %v173
    %v213 = vunpack.c.l.b16 %v174
    %v214 = vunpack.c.l.b16 %v175
    %v215 = vunpack.c.l.b16 %v176
    %v216 = vunpack.c.l.b16 %v177
    %v217 = vunpack.c.l.b16 %v178
    %v218 = vunpack.c.l.b16 %v179
    %v219 = vunpack.c.l.b16 %v180
    %v220 = vunpack.c.l.b16 %v181
    %v221 = vunpack.c.l.b16 %v182
    %v222 = vunpack.c.l.b16 %v183
    %v223 = vunpack.c.l.b16 %v184
    %v224 = vunpack.c.l.b16 %v185
    %v225 = vunpack.c.l.b16 %v186
    %v226 = vunpack.c.l.b16 %v187
    %v227 = vpack.c.b16 %v212, %v211
    %v228 = vpack.c.b16 %v214, %v213
    %v229 = vpack.c.b16 %v216, %v215
    %v230 = vpack.c.b16 %v218, %v217
    %v231 = vpack.c.b16 %v220, %v219
    %v232 = vpack.c.b16 %v222, %v221
    %v233 = vpack.c.b16 %v224, %v223
    %v234 = vpack.c.b16 %v226, %v225
    %243 = vmatprep.subr.bf16.mxu0 0
    %244 = vmatpush1.bf16.msra.mxu0 %v227
    %245 = vmatprep.subr.bf16.mxu0 0
    %246 = vmatpush1.bf16.msra.mxu0 %v228
    %247 = vmatprep.subr.bf16.mxu0 0
    %248 = vmatpush1.bf16.msra.mxu0 %v229
    %249 = vmatprep.subr.bf16.mxu0 0
    %250 = vmatpush1.bf16.msra.mxu0 %v230
    %251 = vmatprep.subr.bf16.mxu0 0
    %252 = vmatpush1.bf16.msra.mxu0 %v231
    %253 = vmatprep.subr.bf16.mxu0 0
    %254 = vmatpush1.bf16.msra.mxu0 %v232
    %255 = vmatprep.subr.bf16.mxu0 0
    %256 = vmatpush1.bf16.msra.mxu0 %v233
    %257 = vmatprep.subr.bf16.mxu0 0
    %258 = vmatpush1.bf16.msra.mxu0 %v234
    %259 = vmatprep.subr.bf16.mxu0 0
    %260 = vmatpush1.bf16.msra.mxu0 0
    %261 = vmatprep.subr.bf16.mxu0 0
    %262 = vmatpush1.bf16.msra.mxu0 0
    %263 = vmatprep.subr.bf16.mxu0 0
    %264 = vmatpush1.bf16.msra.mxu0 0
    %265 = vmatprep.subr.bf16.mxu0 0
    %266 = vmatpush1.bf16.msra.mxu0 0
    %267 = vmatprep.subr.bf16.mxu0 0
    %268 = vmatpush1.bf16.msra.mxu0 0
    %269 = vmatprep.subr.bf16.mxu0 0
    %270 = vmatpush1.bf16.msra.mxu0 0
    %271 = vmatprep.subr.bf16.mxu0 0
    %272 = vmatpush1.bf16.msra.mxu0 0
    %273 = vmatprep.subr.bf16.mxu0 0
    %274 = vmatpush1.bf16.msra.mxu0 0
    %275 = vmatprep.mubr.bf16.mxu0 0
    %276 = vmatmul.mubr.bf16.gmra.mrb[0].mxu0 %v171
    %v277 = vpop.f32.mrb[0].mxu0
    %v278 = vadd.f32 %v193, %v277
    %v279 = vpop.f32.mrb[0].mxu0
    %v280 = vpop.f32.mrb[0].mxu0
    %v281 = vadd.f32 %v193, %v280
    %v282 = vpop.f32.mrb[0].mxu0
    %283 = vdwg.mxu0
    %284 = vst [vmem:[%s5] sm:$0xff] %v278
    %285 = vst [vmem:[%s5 + $0x8] sm:$0xff] %v281
    // Predicated region
    $region30: #{feed_forward.1} parent=1 // pred_check
      _
    $region31: #{feed_forward.1} parent=1 // pred_check_branch
      %287 = sbr.rel (0) target = $region33
    $region32: #{feed_forward.1} parent=1 // pred_region
      _
    $region33: #{feed_forward.1} parent=1 // pred_fallthru
      _
    // Predicated region
    $region34: #{feed_forward.1} parent=1 // pred_check
      _
    $region35: #{feed_forward.1} parent=1 // pred_check_branch
      %289 = sbr.rel (0) target = $region37
    $region36: #{feed_forward.1} parent=1 // pred_region
      _
    $region37: #{feed_forward.1} parent=1 // pred_fallthru
      _
    %290 = vsyncpa [#allocation3], 1
    %291 = vsyncpa [#allocation5], 1

</llo_original>
